<compile_context>
chip_gen: v5e
topology: v5e:2x2
jax: 0.10.0
libtpu: 0.0.40
codegen_flags: <defaults>
</compile_context>

<pallas_src>
import functools

import numpy as np
import jax
import jax.numpy as jnp
from jax import lax
from jax.experimental import pallas as pl
from jax.experimental.pallas import tpu as pltpu

BN_EPS = 1e-5
LANE = 128      # K/N lane alignment.  TODO(synk): bump the N-axis alignment to 256
                # on v6e/v7x (2x256^2 MXU) once real widths are >=128; 128 is
                # optimal for v5e and for these toy widths.
SUBLANE = 16    # bf16 sublane packing for the batch axis.


def _round_up(n, m):
    return (n + m - 1) // m * m


def _pad(n):
    return _round_up(n, LANE)


def _k_offsets(embedding_dim, generator_dim):
    """Lane-aligned end offsets of [x0, h_0, h_1, ...] inside the concat scratch."""
    offs = [_pad(embedding_dim)]
    for item in generator_dim:
        offs.append(offs[-1] + _pad(item))
    return tuple(offs)


def _generator_kernel(n_residual, true_b, offs, x_ref, *refs):
    """refs = (W_0, g_0, be_0, ..., W_{R-1}, g_{R-1}, be_{R-1}, W_f, b_f, out_ref, cat_ref).

    cat_ref is a persistent bf16 VMEM scratch holding the never-materialized
    concat [x0 | h_0 | ... | h_{R-1}], each piece at a static 128-lane-aligned
    offset (offs).  Every Linear is one MXU dot over a contiguous K slice of it.
    """
    out_ref, cat_ref = refs[-2], refs[-1]
    p = refs[:-2]

    b_p = cat_ref.shape[0]
    inv_b = jnp.float32(1.0 / true_b)

    # Seed the concat scratch with x0 (lane-padded bf16 from the wrapper).
    cat_ref[:, 0:offs[0]] = x_ref[...]

    row_mask = None
    if b_p != true_b:
        # Zero-pad rows must stay exactly zero so BN sums over the padded batch
        # equal sums over the true batch.
        row_ids = lax.broadcasted_iota(jnp.int32, (b_p, 1), 0)
        row_mask = row_ids < true_b

    idx = 0
    for r in range(n_residual):
        w_ref, g_ref, be_ref = p[idx], p[idx + 1], p[idx + 2]
        idx += 3

        # Linear (bias dropped: cancelled by batch-stat BN). bf16 MXU, f32 acc.
        h = jnp.dot(cat_ref[:, 0:offs[r]], w_ref[...],
                    preferred_element_type=jnp.float32)

        # Fused BatchNorm1d (training mode: batch stats, biased var) + affine + ReLU.
        # Padded rows of h are zero, so sum * (1/true_b) gives exact batch stats.
        mean = jnp.sum(h, axis=0, keepdims=True) * inv_b
        msq = jnp.sum(h * h, axis=0, keepdims=True) * inv_b
        var = jnp.maximum(msq - mean * mean, 0.0)
        scale = g_ref[...] * lax.rsqrt(var + BN_EPS)        # EUP slot
        shift = be_ref[...] - mean * scale
        a = jnp.maximum(h * scale + shift, 0.0)             # one VPU pass
        if row_mask is not None:
            a = jnp.where(row_mask, a, 0.0)

        # Append to the concat: static, tile-aligned bf16 store (no relayout).
        cat_ref[:, offs[r]:offs[r + 1]] = a.astype(jnp.bfloat16)

    # Final Linear over the full concat.
    wf_ref, bf_ref = p[idx], p[idx + 1]
    out = jnp.dot(cat_ref[:, 0:offs[-1]], wf_ref[...],
                  preferred_element_type=jnp.float32)
    out_ref[...] = (out + bf_ref[...]).astype(out_ref.dtype)


def make_generator_params(key, embedding_dim, generator_dim, data_dim):
    """Deterministic synthetic parameters (PyTorch-style fan-in scaling, f32).

    Residual-block biases are created for the full-precision reference even
    though the kernel drops them (cancelled exactly by batch-stat BatchNorm)."""
    params = []
    dim = embedding_dim
    for item in generator_dim:
        key, kw, kb = jax.random.split(key, 3)
        bound = 1.0 / float(np.sqrt(dim))
        W = jax.random.uniform(kw, (dim, item), jnp.float32, -bound, bound)
        b = jax.random.uniform(kb, (1, item), jnp.float32, -bound, bound)
        gamma = jnp.ones((1, item), jnp.float32)
        beta = jnp.zeros((1, item), jnp.float32)
        params += [W, b, gamma, beta]
        dim += item
    key, kw, kb = jax.random.split(key, 3)
    bound = 1.0 / float(np.sqrt(dim))
    Wf = jax.random.uniform(kw, (dim, data_dim), jnp.float32, -bound, bound)
    bf = jax.random.uniform(kb, (1, data_dim), jnp.float32, -bound, bound)
    params += [Wf, bf]
    return params


def prepare_generator_params(params, embedding_dim, generator_dim, data_dim):
    """One-time host-side prep: re-order every Linear's rows from the PyTorch
    concat order [h_{r-1},...,h_0,x0] to the scratch order [x0,h_0,...,h_{r-1}],
    insert the lane-padding rows, zero-pad columns to 128 lanes, cast to bf16.

    Returns the flat arg list consumed by the kernel:
      [W_0, gamma_0, beta_0, ..., W_{R-1}, gamma_{R-1}, beta_{R-1}, W_f, b_f]."""
    generator_dim = tuple(generator_dim)
    n_res = len(generator_dim)
    offs = _k_offsets(embedding_dim, generator_dim)

    def stack_w(W, n_pieces, out_dim):
        # W rows (PyTorch concat order): [h_{n_pieces-2}, ..., h_0, x0].
        widths_pt = [generator_dim[j] for j in range(n_pieces - 2, -1, -1)]
        widths_pt = widths_pt + [embedding_dim]
        st = np.cumsum([0] + widths_pt)
        Wnp = np.asarray(W, np.float32)
        out_p = _pad(out_dim)
        k_total = offs[n_pieces - 1]
        Wp = np.zeros((k_total, out_p), np.float32)
        # x0 piece -> rows [0, embedding_dim)
        Wp[0:embedding_dim, 0:out_dim] = Wnp[st[-2]:st[-1], :]
        # h_i piece -> rows [offs[i], offs[i] + generator_dim[i])
        for i in range(n_pieces - 1):
            pt_idx = (n_pieces - 2) - i
            Wp[offs[i]:offs[i] + generator_dim[i], 0:out_dim] = (
                Wnp[st[pt_idx]:st[pt_idx + 1], :])
        return jnp.asarray(Wp, dtype=jnp.bfloat16)

    def pad_row(a, cols_p):
        out = np.zeros((1, cols_p), np.float32)
        out[:, :a.shape[1]] = np.asarray(a, np.float32)
        return jnp.asarray(out)

    prepared = []
    for r, item in enumerate(generator_dim):
        W = params[4 * r]                       # bias params[4r+1] dropped (BN cancels it)
        gamma, beta = params[4 * r + 2], params[4 * r + 3]
        item_p = _pad(item)
        prepared.append(stack_w(W, r + 1, item))
        prepared.append(pad_row(gamma, item_p))
        prepared.append(pad_row(beta, item_p))
    Wf, bf = params[4 * n_res], params[4 * n_res + 1]
    prepared.append(stack_w(Wf, n_res + 1, data_dim))
    prepared.append(pad_row(bf, _pad(data_dim)))
    return prepared


def make_generator_forward(embedding_dim, generator_dim, data_dim):
    """Builds a jitted forward(x, prepared) -> (B, data_dim) f32."""
    generator_dim = tuple(generator_dim)
    n_res = len(generator_dim)
    offs = _k_offsets(embedding_dim, generator_dim)
    e_p = offs[0]
    total_k = offs[-1]
    data_p = _pad(data_dim)

    @jax.jit
    def forward(x, prepared):
        B = x.shape[0]
        B_p = _round_up(B, SUBLANE)

        # Lane- and sublane-padded bf16 x (MXU operand only; BN math stays f32).
        x_p = jnp.zeros((B_p, e_p), jnp.bfloat16)
        x_p = x_p.at[:B, :embedding_dim].set(x.astype(jnp.bfloat16))

        # Whole problem is VMEM-resident in one grid step (BN needs global batch
        # stats).  Size the scoped-VMEM limit explicitly, capped at v7x physical.
        w_bytes = sum(int(np.prod(a.shape)) * a.dtype.itemsize for a in prepared)
        widest = max([_pad(i) for i in generator_dim] + [data_p])
        need = (B_p * total_k * 2            # concat scratch (bf16)
                + B_p * e_p * 2              # x
                + B_p * data_p * 4           # out
                + w_bytes
                + 4 * B_p * widest * 4)      # live f32 intermediates (h, a, ...)
        vmem_limit = int(min(64 << 20, max(32 << 20, 2 * need)))

        kernel = functools.partial(_generator_kernel, n_res, B, offs)
        out_p = pl.pallas_call(
            kernel,
            out_shape=jax.ShapeDtypeStruct((B_p, data_p), jnp.float32),
            in_specs=[pl.BlockSpec(memory_space=pltpu.VMEM)] * (1 + len(prepared)),
            out_specs=pl.BlockSpec(memory_space=pltpu.VMEM),
            scratch_shapes=[pltpu.VMEM((B_p, total_k), jnp.bfloat16)],
            compiler_params=pltpu.CompilerParams(vmem_limit_bytes=vmem_limit),
        )(x_p, *prepared)
        return out_p[:B, :data_dim]

    return forward


def generator_reference(x, params, generator_dim):
    """Full-precision plain-JAX reference with the original PyTorch math
    (including the pre-BN Linear biases, which are cancelled by BN)."""
    n_residual = len(generator_dim)
    h = x
    for r in range(n_residual):
        W, b, g, be = params[4 * r:4 * r + 4]
        y = h @ W + b
        mean = jnp.mean(y, axis=0, keepdims=True)
        var = jnp.mean((y - mean) ** 2, axis=0, keepdims=True)
        y = (y - mean) / jnp.sqrt(var + BN_EPS)
        y = jnp.maximum(y * g + be, 0.0)
        h = jnp.concatenate([y, h], axis=1)
    Wf, bf = params[4 * n_residual], params[4 * n_residual + 1]
    return h @ Wf + bf


def generator_reference_bf16(x, params, generator_dim):
    """Reference that emulates the kernel's numerics: bf16 MXU inputs, f32
    accumulation, fused BN (E[h^2]-mean^2), bias-free residual Linears."""
    n_residual = len(generator_dim)
    h = x
    for r in range(n_residual):
        W, _, g, be = params[4 * r:4 * r + 4]
        y = jnp.dot(h.astype(jnp.bfloat16), W.astype(jnp.bfloat16),
                    preferred_element_type=jnp.float32)
        mean = jnp.mean(y, axis=0, keepdims=True)
        var = jnp.maximum(jnp.mean(y * y, axis=0, keepdims=True) - mean * mean, 0.0)
        scale = g * lax.rsqrt(var + BN_EPS)
        shift = be - mean * scale
        y = jnp.maximum(y * scale + shift, 0.0)
        h = jnp.concatenate([y, h], axis=1)
    Wf, bf = params[4 * n_residual], params[4 * n_residual + 1]
    return jnp.dot(h.astype(jnp.bfloat16), Wf.astype(jnp.bfloat16),
                   preferred_element_type=jnp.float32) + bf


if __name__ == "__main__":
    # Small shapes consistent with CTGAN Generator(embedding_dim, generator_dim, data_dim).
    batch = 8
    embedding_dim = 32
    generator_dim = (32, 64)
    data_dim = 16

    key = jax.random.PRNGKey(0)
    key, kx = jax.random.split(key)
    x = jax.random.normal(kx, (batch, embedding_dim), jnp.float32)
    params = make_generator_params(key, embedding_dim, generator_dim, data_dim)

    # One-time prep (weight re-ordering / padding / bf16 cast) + jitted forward.
    prepared = prepare_generator_params(params, embedding_dim, generator_dim, data_dim)
    forward = make_generator_forward(embedding_dim, generator_dim, data_dim)

    out = forward(x, prepared)
    out = jax.block_until_ready(out)
    assert out.shape == (batch, data_dim)

    # Tight check against a reference emulating the kernel's bf16-dot math.
    ref_bf16 = generator_reference_bf16(x, params, generator_dim)
    assert jnp.allclose(out, ref_bf16, atol=2e-3, rtol=2e-3), float(
        jnp.max(jnp.abs(out - ref_bf16)))

    # Looser check against the full-precision PyTorch-semantics reference
    # (difference is only bf16 rounding of the MXU operands).
    ref_f32 = generator_reference(x, params, generator_dim)
    assert jnp.allclose(out, ref_f32, atol=5e-2, rtol=5e-2), float(
        jnp.max(jnp.abs(out - ref_f32)))

    print("KERNEL_OK")
</pallas_src>

<mosaic_0001>
module attributes {stable_mosaic.version = 11 : i64} {
  func.func @_generator_kernel(%arg0: memref<16x128xbf16, #tpu.memory_space<vmem>>, %arg1: memref<128x128xbf16, #tpu.memory_space<vmem>>, %arg2: memref<1x128xf32, #tpu.memory_space<vmem>>, %arg3: memref<1x128xf32, #tpu.memory_space<vmem>>, %arg4: memref<256x128xbf16, #tpu.memory_space<vmem>>, %arg5: memref<1x128xf32, #tpu.memory_space<vmem>>, %arg6: memref<1x128xf32, #tpu.memory_space<vmem>>, %arg7: memref<384x128xbf16, #tpu.memory_space<vmem>>, %arg8: memref<1x128xf32, #tpu.memory_space<vmem>>, %arg9: memref<16x128xf32, #tpu.memory_space<vmem>>, %arg10: memref<16x384xbf16, #tpu.memory_space<vmem>>) attributes {dimension_semantics = [], scalar_prefetch = 0 : i64, scratch_operands = 1 : i64, tpu.core_type = #tpu.core_type<tc>} {
    %c0 = arith.constant 0 : index
    %c0_0 = arith.constant 0 : index
    %0 = vector.load %arg0[%c0, %c0_0] : memref<16x128xbf16, #tpu.memory_space<vmem>>, vector<16x128xbf16>
    %c0_1 = arith.constant 0 : index
    %c0_2 = arith.constant 0 : index
    %1 = vector.load %arg10[%c0_1, %c0_2] : memref<16x384xbf16, #tpu.memory_space<vmem>>, vector<16x128xbf16>
    tpu.vector_store %arg10[%c0_1, %c0_2], %0 {strides = array<i32>} : memref<16x384xbf16, #tpu.memory_space<vmem>>, vector<16x128xbf16>,
    %2 = tpu.iota {dimensions = array<i32: 0>} : vector<16x1xi32>
    %c8_i32 = arith.constant 8 : i32
    %3 = vector.broadcast %c8_i32 : i32 to vector<16x1xi32>
    %4 = arith.cmpi slt, %2, %3 : vector<16x1xi32>
    %c0_3 = arith.constant 0 : index
    %c0_4 = arith.constant 0 : index
    %5 = vector.load %arg10[%c0_3, %c0_4] : memref<16x384xbf16, #tpu.memory_space<vmem>>, vector<16x128xbf16>
    %c0_5 = arith.constant 0 : index
    %c0_6 = arith.constant 0 : index
    %6 = vector.load %arg1[%c0_5, %c0_6] : memref<128x128xbf16, #tpu.memory_space<vmem>>, vector<128x128xbf16>
    %cst = arith.constant dense<0.000000e+00> : vector<16x128xf32>
    %7 = tpu.matmul %5, %6, %cst {dimension_numbers = #tpu.dot_dimension_numbers<[1], [0], [0], [1], [0, 0, 1, 1], [], []>} : vector<16x128xbf16>, vector<128x128xbf16>, vector<16x128xf32> -> vector<16x128xf32>
    %cst_7 = arith.constant dense<0.000000e+00> : vector<128xf32>
    %8 = vector.multi_reduction <add>, %7, %cst_7 [0] : vector<16x128xf32> to vector<128xf32>
    %9 = vector.shape_cast %8 : vector<128xf32> to vector<1x128xf32>
    %cst_8 = arith.constant 1.250000e-01 : f32
    %10 = vector.broadcast %cst_8 : f32 to vector<1x128xf32>
    %11 = arith.mulf %9, %10 : vector<1x128xf32>
    %12 = arith.mulf %7, %7 : vector<16x128xf32>
    %cst_9 = arith.constant dense<0.000000e+00> : vector<128xf32>
    %13 = vector.multi_reduction <add>, %12, %cst_9 [0] : vector<16x128xf32> to vector<128xf32>
    %14 = vector.shape_cast %13 : vector<128xf32> to vector<1x128xf32>
    %cst_10 = arith.constant 1.250000e-01 : f32
    %15 = vector.broadcast %cst_10 : f32 to vector<1x128xf32>
    %16 = arith.mulf %14, %15 : vector<1x128xf32>
    %17 = arith.mulf %11, %11 : vector<1x128xf32>
    %18 = arith.subf %16, %17 : vector<1x128xf32>
    %cst_11 = arith.constant 0.000000e+00 : f32
    %19 = vector.broadcast %cst_11 : f32 to vector<1x128xf32>
    %20 = arith.maximumf %18, %19 : vector<1x128xf32>
    %c0_12 = arith.constant 0 : index
    %c0_13 = arith.constant 0 : index
    %21 = vector.load %arg2[%c0_12, %c0_13] : memref<1x128xf32, #tpu.memory_space<vmem>>, vector<1x128xf32>
    %cst_14 = arith.constant 9.99999974E-6 : f32
    %22 = vector.broadcast %cst_14 : f32 to vector<1x128xf32>
    %23 = arith.addf %20, %22 : vector<1x128xf32>
    %24 = math.rsqrt %23 : vector<1x128xf32>
    %25 = arith.mulf %21, %24 : vector<1x128xf32>
    %c0_15 = arith.constant 0 : index
    %c0_16 = arith.constant 0 : index
    %26 = vector.load %arg3[%c0_15, %c0_16] : memref<1x128xf32, #tpu.memory_space<vmem>>, vector<1x128xf32>
    %27 = arith.mulf %11, %25 : vector<1x128xf32>
    %28 = arith.subf %26, %27 : vector<1x128xf32>
    %29 = vector.broadcast %25 : vector<1x128xf32> to vector<16x128xf32>
    %30 = arith.mulf %7, %29 : vector<16x128xf32>
    %31 = vector.broadcast %28 : vector<1x128xf32> to vector<16x128xf32>
    %32 = arith.addf %30, %31 : vector<16x128xf32>
    %cst_17 = arith.constant 0.000000e+00 : f32
    %33 = vector.broadcast %cst_17 : f32 to vector<16x128xf32>
    %34 = arith.maximumf %32, %33 : vector<16x128xf32>
    %cst_18 = arith.constant 0.000000e+00 : f32
    %35 = vector.shape_cast %4 : vector<16x1xi1> to vector<16x1xi1>
    %36 = vector.broadcast %35 : vector<16x1xi1> to vector<16x128xi1>
    %37 = vector.broadcast %cst_18 : f32 to vector<16x128xf32>
    %38 = arith.select %36, %34, %37 : vector<16x128xi1>, vector<16x128xf32>
    %39 = arith.truncf %38 : vector<16x128xf32> to vector<16x128xbf16>
    %c0_19 = arith.constant 0 : index
    %c128 = arith.constant 128 : index
    %40 = vector.load %arg10[%c0_19, %c128] : memref<16x384xbf16, #tpu.memory_space<vmem>>, vector<16x128xbf16>
    tpu.vector_store %arg10[%c0_19, %c128], %39 {strides = array<i32>} : memref<16x384xbf16, #tpu.memory_space<vmem>>, vector<16x128xbf16>,
    %c0_20 = arith.constant 0 : index
    %c0_21 = arith.constant 0 : index
    %41 = vector.load %arg10[%c0_20, %c0_21] : memref<16x384xbf16, #tpu.memory_space<vmem>>, vector<16x256xbf16>
    %c0_22 = arith.constant 0 : index
    %c0_23 = arith.constant 0 : index
    %42 = vector.load %arg4[%c0_22, %c0_23] : memref<256x128xbf16, #tpu.memory_space<vmem>>, vector<256x128xbf16>
    %cst_24 = arith.constant dense<0.000000e+00> : vector<16x128xf32>
    %43 = tpu.matmul %41, %42, %cst_24 {dimension_numbers = #tpu.dot_dimension_numbers<[1], [0], [0], [1], [0, 0, 1, 1], [], []>} : vector<16x256xbf16>, vector<256x128xbf16>, vector<16x128xf32> -> vector<16x128xf32>
    %cst_25 = arith.constant dense<0.000000e+00> : vector<128xf32>
    %44 = vector.multi_reduction <add>, %43, %cst_25 [0] : vector<16x128xf32> to vector<128xf32>
    %45 = vector.shape_cast %44 : vector<128xf32> to vector<1x128xf32>
    %cst_26 = arith.constant 1.250000e-01 : f32
    %46 = vector.broadcast %cst_26 : f32 to vector<1x128xf32>
    %47 = arith.mulf %45, %46 : vector<1x128xf32>
    %48 = arith.mulf %43, %43 : vector<16x128xf32>
    %cst_27 = arith.constant dense<0.000000e+00> : vector<128xf32>
    %49 = vector.multi_reduction <add>, %48, %cst_27 [0] : vector<16x128xf32> to vector<128xf32>
    %50 = vector.shape_cast %49 : vector<128xf32> to vector<1x128xf32>
    %cst_28 = arith.constant 1.250000e-01 : f32
    %51 = vector.broadcast %cst_28 : f32 to vector<1x128xf32>
    %52 = arith.mulf %50, %51 : vector<1x128xf32>
    %53 = arith.mulf %47, %47 : vector<1x128xf32>
    %54 = arith.subf %52, %53 : vector<1x128xf32>
    %cst_29 = arith.constant 0.000000e+00 : f32
    %55 = vector.broadcast %cst_29 : f32 to vector<1x128xf32>
    %56 = arith.maximumf %54, %55 : vector<1x128xf32>
    %c0_30 = arith.constant 0 : index
    %c0_31 = arith.constant 0 : index
    %57 = vector.load %arg5[%c0_30, %c0_31] : memref<1x128xf32, #tpu.memory_space<vmem>>, vector<1x128xf32>
    %cst_32 = arith.constant 9.99999974E-6 : f32
    %58 = vector.broadcast %cst_32 : f32 to vector<1x128xf32>
    %59 = arith.addf %56, %58 : vector<1x128xf32>
    %60 = math.rsqrt %59 : vector<1x128xf32>
    %61 = arith.mulf %57, %60 : vector<1x128xf32>
    %c0_33 = arith.constant 0 : index
    %c0_34 = arith.constant 0 : index
    %62 = vector.load %arg6[%c0_33, %c0_34] : memref<1x128xf32, #tpu.memory_space<vmem>>, vector<1x128xf32>
    %63 = arith.mulf %47, %61 : vector<1x128xf32>
    %64 = arith.subf %62, %63 : vector<1x128xf32>
    %65 = vector.broadcast %61 : vector<1x128xf32> to vector<16x128xf32>
    %66 = arith.mulf %43, %65 : vector<16x128xf32>
    %67 = vector.broadcast %64 : vector<1x128xf32> to vector<16x128xf32>
    %68 = arith.addf %66, %67 : vector<16x128xf32>
    %cst_35 = arith.constant 0.000000e+00 : f32
    %69 = vector.broadcast %cst_35 : f32 to vector<16x128xf32>
    %70 = arith.maximumf %68, %69 : vector<16x128xf32>
    %cst_36 = arith.constant 0.000000e+00 : f32
    %71 = vector.shape_cast %4 : vector<16x1xi1> to vector<16x1xi1>
    %72 = vector.broadcast %71 : vector<16x1xi1> to vector<16x128xi1>
    %73 = vector.broadcast %cst_36 : f32 to vector<16x128xf32>
    %74 = arith.select %72, %70, %73 : vector<16x128xi1>, vector<16x128xf32>
    %75 = arith.truncf %74 : vector<16x128xf32> to vector<16x128xbf16>
    %c0_37 = arith.constant 0 : index
    %c256 = arith.constant 256 : index
    %76 = vector.load %arg10[%c0_37, %c256] : memref<16x384xbf16, #tpu.memory_space<vmem>>, vector<16x128xbf16>
    tpu.vector_store %arg10[%c0_37, %c256], %75 {strides = array<i32>} : memref<16x384xbf16, #tpu.memory_space<vmem>>, vector<16x128xbf16>,
    %c0_38 = arith.constant 0 : index
    %c0_39 = arith.constant 0 : index
    %77 = vector.load %arg10[%c0_38, %c0_39] : memref<16x384xbf16, #tpu.memory_space<vmem>>, vector<16x384xbf16>
    %c0_40 = arith.constant 0 : index
    %c0_41 = arith.constant 0 : index
    %78 = vector.load %arg7[%c0_40, %c0_41] : memref<384x128xbf16, #tpu.memory_space<vmem>>, vector<384x128xbf16>
    %cst_42 = arith.constant dense<0.000000e+00> : vector<16x128xf32>
    %79 = tpu.matmul %77, %78, %cst_42 {dimension_numbers = #tpu.dot_dimension_numbers<[1], [0], [0], [1], [0, 0, 1, 1], [], []>} : vector<16x384xbf16>, vector<384x128xbf16>, vector<16x128xf32> -> vector<16x128xf32>
    %c0_43 = arith.constant 0 : index
    %c0_44 = arith.constant 0 : index
    %80 = vector.load %arg8[%c0_43, %c0_44] : memref<1x128xf32, #tpu.memory_space<vmem>>, vector<1x128xf32>
    %81 = vector.broadcast %80 : vector<1x128xf32> to vector<16x128xf32>
    %82 = arith.addf %79, %81 : vector<16x128xf32>
    %c0_45 = arith.constant 0 : index
    %c0_46 = arith.constant 0 : index
    %83 = vector.load %arg9[%c0_45, %c0_46] : memref<16x128xf32, #tpu.memory_space<vmem>>, vector<16x128xf32>
    tpu.vector_store %arg9[%c0_45, %c0_46], %82 {strides = array<i32>} : memref<16x128xf32, #tpu.memory_space<vmem>>, vector<16x128xf32>,
    return
  }
}

</mosaic_0001>

<llo_original>
// kernel: forward.1
$region0: #{forward.1}
  #allocation0 [shape = 'u32[]', space=smem, size = 0x4, offset = 0x4, fixed_abs, tag = 'smem constant byte address 0x4 - core index']
  #allocation1 [shape = 'u32[72,128]{1,0:T(1,128)}', space=vmem, size = 0x9000, scoped, tag = 'internal scratch']
  #allocation2 [shape = 'bf16[16,384]{1,0:T(8,128)(2,1)}', space=vmem, size = 0x3000, scoped, tag = 'scratch operand']
  %s0 = inlined_call_operand.vmem [shape: bf16[16,128], index: 0, kind: input, shape index: {}]
  %s1 = inlined_call_operand.hbm [shape: bf16[128,128], index: 1, kind: input, shape index: {}]
  %s2 = inlined_call_operand.vmem [shape: f32[1,128], index: 2, kind: input, shape index: {}]
  %s3 = inlined_call_operand.vmem [shape: f32[1,128], index: 3, kind: input, shape index: {}]
  %s4 = inlined_call_operand.hbm [shape: bf16[256,128], index: 4, kind: input, shape index: {}]
  %s5 = inlined_call_operand.vmem [shape: f32[1,128], index: 5, kind: input, shape index: {}]
  %s6 = inlined_call_operand.vmem [shape: f32[1,128], index: 6, kind: input, shape index: {}]
  %s7 = inlined_call_operand.hbm [shape: bf16[384,128], index: 7, kind: input, shape index: {}]
  %s8 = inlined_call_operand.vmem [shape: f32[1,128], index: 8, kind: input, shape index: {}]
  %s9 = inlined_call_operand.vmem [shape: f32[16,128], index: 9, kind: output, shape index: {}]
  %s10 = sld [smem:[#allocation0]]
  $region58: #{forward.1} parent=0
    _
  %s12 = ssub.s32 1, %s10
  %s13 = scalar_select 0, %s12, %s10
  $region1: #{forward.1} parent=0
    #allocation3 [shape = 'u8[32768]{0}', space=vmem, size = 0x8000, scoped, tag = 'input window, operand 1, single buffered']
    #allocation4 [shape = 's32[1]{0}', space=sflag, size = 0x4, scoped, tag = 'scoped memory for forward.1']
    #allocation5 [shape = 'u8[65536]{0}', space=vmem, size = 0x10000, scoped, tag = 'input window, operand 4, single buffered']
    #allocation6 [shape = 's32[1]{0}', space=sflag, size = 0x4, scoped, tag = 'scoped memory for forward.1']
    #allocation7 [shape = 'u8[98304]{0}', space=vmem, size = 0x18000, scoped, tag = 'input window, operand 7, single buffered']
    %14 = vsyncpa [#allocation4], 0
    %15 = vsyncpa [#allocation6], 0
    // Predicated region
    $region2: #{forward.1} parent=1 // pred_check
      _
    $region3: #{forward.1} parent=1 // pred_check_branch
      %17 = sbr.rel (0) target = $region5
    $region4: #{forward.1} parent=1 // pred_region
      _
    $region5: #{forward.1} parent=1 // pred_fallthru
      _
    // Predicated region
    $region6: #{forward.1} parent=1 // pred_check
      _
    $region7: #{forward.1} parent=1 // pred_check_branch
      %19 = sbr.rel (0) target = $region9
    $region8: #{forward.1} parent=1 // pred_region
      %21 = vsyncadd [#allocation4], 0
      %s22 = sshll.u32 %s1, 4
      %s23 = int_to_ptr.hbm [resolvable:$true] %s22
      %s24 = sshll.u32 [#allocation3], 4
      %s25 = int_to_ptr.vmem [resolvable:$true] %s24
      %30 = dma.hbm_to_vmem [thread:$0]  %s23, 1024, %s25, [#allocation4], 64, 64, 4
    $region9: #{forward.1} parent=1 // pred_fallthru
      _
    // Predicated region
    $region10: #{forward.1} parent=1 // pred_check
      _
    $region11: #{forward.1} parent=1 // pred_check_branch
      %32 = sbr.rel (0) target = $region13
    $region12: #{forward.1} parent=1 // pred_region
      _
    $region13: #{forward.1} parent=1 // pred_fallthru
      _
    // Predicated region
    $region14: #{forward.1} parent=1 // pred_check
      _
    $region15: #{forward.1} parent=1 // pred_check_branch
      %34 = sbr.rel (0) target = $region17
    $region16: #{forward.1} parent=1 // pred_region
      _
    $region17: #{forward.1} parent=1 // pred_fallthru
      _
    // Predicated region
    $region18: #{forward.1} parent=1 // pred_check
      _
    $region19: #{forward.1} parent=1 // pred_check_branch
      %36 = sbr.rel (0) target = $region21
    $region20: #{forward.1} parent=1 // pred_region
      %38 = vsyncadd [#allocation6], 0
      %s39 = sshll.u32 %s4, 4
      %s40 = int_to_ptr.hbm [resolvable:$true] %s39
      %s41 = sshll.u32 [#allocation5], 4
      %s42 = int_to_ptr.vmem [resolvable:$true] %s41
      %47 = dma.hbm_to_vmem [thread:$0]  %s40, 2048, %s42, [#allocation6], 64, 64, 4
    $region21: #{forward.1} parent=1 // pred_fallthru
      _
    // Predicated region
    $region22: #{forward.1} parent=1 // pred_check
      _
    $region23: #{forward.1} parent=1 // pred_check_branch
      %49 = sbr.rel (0) target = $region25
    $region24: #{forward.1} parent=1 // pred_region
      _
    $region25: #{forward.1} parent=1 // pred_fallthru
      _
    // Predicated region
    $region26: #{forward.1} parent=1 // pred_check
      _
    $region27: #{forward.1} parent=1 // pred_check_branch
      %51 = sbr.rel (0) target = $region29
    $region28: #{forward.1} parent=1 // pred_region
      _
    $region29: #{forward.1} parent=1 // pred_fallthru
      _
    // Predicated region
    $region30: #{forward.1} parent=1 // pred_check
      _
    $region31: #{forward.1} parent=1 // pred_check_branch
      %53 = sbr.rel (0) target = $region33
    $region32: #{forward.1} parent=1 // pred_region
      %55 = vsyncadd [#allocation6], 0
      %s56 = sshll.u32 %s7, 4
      %s57 = int_to_ptr.hbm [resolvable:$true] %s56
      %s58 = sshll.u32 [#allocation7], 4
      %s59 = int_to_ptr.vmem [resolvable:$true] %s58
      %64 = dma.hbm_to_vmem [thread:$0]  %s57, 3072, %s59, [#allocation6], 64, 64, 4
    $region33: #{forward.1} parent=1 // pred_fallthru
      _
    // Predicated region
    $region34: #{forward.1} parent=1 // pred_check
      _
    $region35: #{forward.1} parent=1 // pred_check_branch
      %66 = sbr.rel (0) target = $region37
    $region36: #{forward.1} parent=1 // pred_region
      _
    $region37: #{forward.1} parent=1 // pred_fallthru
      _
    // Predicated region
    $region38: #{forward.1} parent=1 // pred_check
      _
    $region39: #{forward.1} parent=1 // pred_check_branch
      %68 = sbr.rel (0) target = $region41
    $region40: #{forward.1} parent=1 // pred_region
      %70 = dma.done [#allocation4], 1024
    $region41: #{forward.1} parent=1 // pred_fallthru
      _
    // Predicated region
    $region42: #{forward.1} parent=1 // pred_check
      _
    $region43: #{forward.1} parent=1 // pred_check_branch
      %72 = sbr.rel (0) target = $region45
    $region44: #{forward.1} parent=1 // pred_region
      %74 = dma.done [#allocation6], 2048
    $region45: #{forward.1} parent=1 // pred_fallthru
      _
    // Predicated region
    $region46: #{forward.1} parent=1 // pred_check
      _
    $region47: #{forward.1} parent=1 // pred_check_branch
      %76 = sbr.rel (0) target = $region49
    $region48: #{forward.1} parent=1 // pred_region
      %78 = dma.done [#allocation6], 3072
    $region49: #{forward.1} parent=1 // pred_fallthru
      _
    %v79 = vld [vmem:[%s0] sm:$0xf]
    %v80 = vld [vmem:[%s0 + $0x4] sm:$0xf]
    %81 = vst [vmem:[#allocation2] sm:$0xf] %v79
    %82 = vst [vmem:[#allocation2 + $0xc] sm:$0xf] %v80
    %v83 = vlaneseq
    %v84 = vshrl.u32 %v83, 7
    %v85 = vadd.s32 %v84, 8
    %vm86 = vcmp.lt.s32.totalorder %v84, 8
    %vm87 = vcmp.lt.s32.totalorder %v85, 8
    %v88 = vld [vmem:[#allocation2] sm:$0xf]
    %v89 = vld [vmem:[#allocation2 + $0xc] sm:$0xf]
    %v90 = vld [vmem:[#allocation3] sm:$0xf]
    %v91 = vld [vmem:[#allocation3 + $0x4] sm:$0xf]
    %v92 = vld [vmem:[#allocation3 + $0x8] sm:$0xf]
    %v93 = vld [vmem:[#allocation3 + $0xc] sm:$0xf]
    %v94 = vld [vmem:[#allocation3 + $0x10] sm:$0xf]
    %v95 = vld [vmem:[#allocation3 + $0x14] sm:$0xf]
    %v96 = vld [vmem:[#allocation3 + $0x18] sm:$0xf]
    %v97 = vld [vmem:[#allocation3 + $0x1c] sm:$0xf]
    %v98 = vld [vmem:[#allocation3 + $0x20] sm:$0xf]
    %v99 = vld [vmem:[#allocation3 + $0x24] sm:$0xf]
    %v100 = vld [vmem:[#allocation3 + $0x28] sm:$0xf]
    %v101 = vld [vmem:[#allocation3 + $0x2c] sm:$0xf]
    %v102 = vld [vmem:[#allocation3 + $0x30] sm:$0xf]
    %v103 = vld [vmem:[#allocation3 + $0x34] sm:$0xf]
    %v104 = vld [vmem:[#allocation3 + $0x38] sm:$0xf]
    %v105 = vld [vmem:[#allocation3 + $0x3c] sm:$0xf]
    %v108 = vunpack.c.l.b16 %v88
    %v109 = vunpack.c.l.b16 %v89
    %v110 = vpack.c.b16 %v109, %v108
    %v128 = vunpack.c.l.b16 %v90
    %v129 = vunpack.c.l.b16 %v91
    %v130 = vunpack.c.l.b16 %v92
    %v131 = vunpack.c.l.b16 %v93
    %v132 = vunpack.c.l.b16 %v94
    %v133 = vunpack.c.l.b16 %v95
    %v134 = vunpack.c.l.b16 %v96
    %v135 = vunpack.c.l.b16 %v97
    %v136 = vunpack.c.l.b16 %v98
    %v137 = vunpack.c.l.b16 %v99
    %v138 = vunpack.c.l.b16 %v100
    %v139 = vunpack.c.l.b16 %v101
    %v140 = vunpack.c.l.b16 %v102
    %v141 = vunpack.c.l.b16 %v103
    %v142 = vunpack.c.l.b16 %v104
    %v143 = vunpack.c.l.b16 %v105
    %v144 = vpack.c.b16 %v129, %v128
    %v145 = vpack.c.b16 %v131, %v130
    %v146 = vpack.c.b16 %v133, %v132
    %v147 = vpack.c.b16 %v135, %v134
    %v148 = vpack.c.b16 %v137, %v136
    %v149 = vpack.c.b16 %v139, %v138
    %v150 = vpack.c.b16 %v141, %v140
    %v151 = vpack.c.b16 %v143, %v142
    %160 = vmatpush.bf16.msra.mxu0 %v151
    %161 = vmatpush.bf16.msra.mxu0 %v150
    %162 = vmatpush.bf16.msra.mxu0 %v149
    %163 = vmatpush.bf16.msra.mxu0 %v148
    %164 = vmatpush.bf16.msra.mxu0 %v147
    %165 = vmatpush.bf16.msra.mxu0 %v146
    %166 = vmatpush.bf16.msra.mxu0 %v145
    %167 = vmatpush.bf16.msra.mxu0 %v144
    %168 = vmatmul.bf16.gmra.mxu0 %v110
    %v169 = vpop.f32.mrf.mxu0
    %v170 = vadd.f32 0.0, %v169
    %v171 = vpop.f32.mrf.mxu0
    %v172 = vadd.f32 0.0, %v171
    %173 = vdwg.mxu0
    %v174 = vadd.f32 %v170, %v172
    %v175 = vrot.slane %v174, 4
    %v176 = vadd.f32 %v174, %v175
    %v177 = vrot.slane %v176, 2
    %v178 = vadd.f32 %v176, %v177
    %v179 = vrot.slane %v178, 1
    %v180 = vadd.f32 %v178, %v179
    %v181 = vmul.f32 %v180, 0.125
    %v182 = vmul.f32 %v170, %v170
    %v183 = vmul.f32 %v172, %v172
    %v184 = vadd.f32 %v182, %v183
    %v185 = vrot.slane %v184, 4
    %v186 = vadd.f32 %v184, %v185
    %v187 = vrot.slane %v186, 2
    %v188 = vadd.f32 %v186, %v187
    %v189 = vrot.slane %v188, 1
    %v190 = vadd.f32 %v188, %v189
    %v191 = vmul.f32 %v190, 0.125
    %v192 = vmul.f32 %v181, %v181
    %v193 = vsub.f32 %v191, %v192
    %v194 = vmax.f32 %v193, 0.0
    %v195 = vld [vmem:[%s2] sm:$0x1]
    %v196 = vadd.f32 %v194, 1e-05
    %v197 = vrsqrt.pop %v196
    %v198 = vmul.f32 %v197, %v196
    %v199 = vmul.f32 %v198, %v197
    %v200 = vmul.f32 0.5, %v199
    %v201 = vsub.f32 1.5, %v200
    %v202 = vmul.f32 %v197, %v201
    %vm203 = vweird.f32 %v196
    %vm204 = vweird.f32 %v197
    %vm205 = vmor %vm203, %vm204
    %v206 = vsel %vm205, %v197, %v202
    %v207 = vmul.f32 %v195, %v206
    %v208 = vld [vmem:[%s3] sm:$0x1]
    %v209 = vmul.f32 %v181, %v207
    %v210 = vsub.f32 %v208, %v209
    %v212 = vperm.slane %v207, 0
    %v214 = vmul.f32 %v170, %v212
    %v215 = vmul.f32 %v172, %v212
    %v217 = vperm.slane %v210, 0
    %v219 = vadd.f32 %v214, %v217
    %v220 = vadd.f32 %v215, %v217
    %v221 = vmax.f32 %v219, 0.0
    %v222 = vmax.f32 %v220, 0.0
    %v223 = vsel %vm86, 1, 0
    %v224 = vsel %vm87, 1, 0
    %vm225 = vcmp.eq.s32.totalorder %v223, 1
    %vm226 = vcmp.eq.s32.totalorder %v224, 1
    %v227 = vsel %vm225, %v221, 0.0
    %v228 = vsel %vm226, %v222, 0.0
    %v229 = vpack.c.bf16 %v227, %v227
    %v230 = vpack.c.bf16 %v228, %v228
    %231 = vst [vmem:[#allocation2 + $0x4] sm:$0xf] %v229
    %232 = vst [vmem:[#allocation2 + $0x10] sm:$0xf] %v230
    %v233 = vld [vmem:[#allocation2] sm:$0xff]
    %v234 = vld [vmem:[#allocation2 + $0xc] sm:$0xff]
    %v235 = vld [vmem:[#allocation5] sm:$0xf]
    %v236 = vld [vmem:[#allocation5 + $0x4] sm:$0xf]
    %v237 = vld [vmem:[#allocation5 + $0x8] sm:$0xf]
    %v238 = vld [vmem:[#allocation5 + $0xc] sm:$0xf]
    %v239 = vld [vmem:[#allocation5 + $0x10] sm:$0xf]
    %v240 = vld [vmem:[#allocation5 + $0x14] sm:$0xf]
    %v241 = vld [vmem:[#allocation5 + $0x18] sm:$0xf]
    %v242 = vld [vmem:[#allocation5 + $0x1c] sm:$0xf]
    %v243 = vld [vmem:[#allocation5 + $0x20] sm:$0xf]
    %v244 = vld [vmem:[#allocation5 + $0x24] sm:$0xf]
    %v245 = vld [vmem:[#allocation5 + $0x28] sm:$0xf]
    %v246 = vld [vmem:[#allocation5 + $0x2c] sm:$0xf]
    %v247 = vld [vmem:[#allocation5 + $0x30] sm:$0xf]
    %v248 = vld [vmem:[#allocation5 + $0x34] sm:$0xf]
    %v249 = vld [vmem:[#allocation5 + $0x38] sm:$0xf]
    %v250 = vld [vmem:[#allocation5 + $0x3c] sm:$0xf]
    %v251 = vld [vmem:[#allocation5 + $0x40] sm:$0xf]
    %v252 = vld [vmem:[#allocation5 + $0x44] sm:$0xf]
    %v253 = vld [vmem:[#allocation5 + $0x48] sm:$0xf]
    %v254 = vld [vmem:[#allocation5 + $0x4c] sm:$0xf]
    %v255 = vld [vmem:[#allocation5 + $0x50] sm:$0xf]
    %v256 = vld [vmem:[#allocation5 + $0x54] sm:$0xf]
    %v257 = vld [vmem:[#allocation5 + $0x58] sm:$0xf]
    %v258 = vld [vmem:[#allocation5 + $0x5c] sm:$0xf]
    %v259 = vld [vmem:[#allocation5 + $0x60] sm:$0xf]
    %v260 = vld [vmem:[#allocation5 + $0x64] sm:$0xf]
    %v261 = vld [vmem:[#allocation5 + $0x68] sm:$0xf]
    %v262 = vld [vmem:[#allocation5 + $0x6c] sm:$0xf]
    %v263 = vld [vmem:[#allocation5 + $0x70] sm:$0xf]
    %v264 = vld [vmem:[#allocation5 + $0x74] sm:$0xf]
    %v265 = vld [vmem:[#allocation5 + $0x78] sm:$0xf]
    %v266 = vld [vmem:[#allocation5 + $0x7c] sm:$0xf]
    %v269 = vunpack.c.l.b16 %v233
    %v270 = vunpack.c.h.b16 %v233
    %v271 = vunpack.c.l.b16 %v234
    %v272 = vunpack.c.h.b16 %v234
    %v273 = vpack.c.b16 %v271, %v269
    %v274 = vpack.c.b16 %v272, %v270
    %v309 = vunpack.c.l.b16 %v235
    %v310 = vunpack.c.l.b16 %v236
    %v311 = vunpack.c.l.b16 %v237
    %v312 = vunpack.c.l.b16 %v238
    %v313 = vunpack.c.l.b16 %v239
    %v314 = vunpack.c.l.b16 %v240
    %v315 = vunpack.c.l.b16 %v241
    %v316 = vunpack.c.l.b16 %v242
    %v317 = vunpack.c.l.b16 %v243
    %v318 = vunpack.c.l.b16 %v244
    %v319 = vunpack.c.l.b16 %v245
    %v320 = vunpack.c.l.b16 %v246
    %v321 = vunpack.c.l.b16 %v247
    %v322 = vunpack.c.l.b16 %v248
    %v323 = vunpack.c.l.b16 %v249
    %v324 = vunpack.c.l.b16 %v250
    %v325 = vunpack.c.l.b16 %v251
    %v326 = vunpack.c.l.b16 %v252
    %v327 = vunpack.c.l.b16 %v253
    %v328 = vunpack.c.l.b16 %v254
    %v329 = vunpack.c.l.b16 %v255
    %v330 = vunpack.c.l.b16 %v256
    %v331 = vunpack.c.l.b16 %v257
    %v332 = vunpack.c.l.b16 %v258
    %v333 = vunpack.c.l.b16 %v259
    %v334 = vunpack.c.l.b16 %v260
    %v335 = vunpack.c.l.b16 %v261
    %v336 = vunpack.c.l.b16 %v262
    %v337 = vunpack.c.l.b16 %v263
    %v338 = vunpack.c.l.b16 %v264
    %v339 = vunpack.c.l.b16 %v265
    %v340 = vunpack.c.l.b16 %v266
    %v341 = vpack.c.b16 %v310, %v309
    %v342 = vpack.c.b16 %v312, %v311
    %v343 = vpack.c.b16 %v314, %v313
    %v344 = vpack.c.b16 %v316, %v315
    %v345 = vpack.c.b16 %v318, %v317
    %v346 = vpack.c.b16 %v320, %v319
    %v347 = vpack.c.b16 %v322, %v321
    %v348 = vpack.c.b16 %v324, %v323
    %v349 = vpack.c.b16 %v326, %v325
    %v350 = vpack.c.b16 %v328, %v327
    %v351 = vpack.c.b16 %v330, %v329
    %v352 = vpack.c.b16 %v332, %v331
    %v353 = vpack.c.b16 %v334, %v333
    %v354 = vpack.c.b16 %v336, %v335
    %v355 = vpack.c.b16 %v338, %v337
    %v356 = vpack.c.b16 %v340, %v339
    %373 = vmatpush.bf16.msra.mxu0 %v348
    %374 = vmatpush.bf16.msra.mxu0 %v347
    %375 = vmatpush.bf16.msra.mxu0 %v346
    %376 = vmatpush.bf16.msra.mxu0 %v345
    %377 = vmatpush.bf16.msra.mxu0 %v344
    %378 = vmatpush.bf16.msra.mxu0 %v343
    %379 = vmatpush.bf16.msra.mxu0 %v342
    %380 = vmatpush.bf16.msra.mxu0 %v341
    %381 = vmatmul.bf16.gmra.mxu0 %v273
    %v382 = vpop.f32.mrf.mxu0
    %v383 = vadd.f32 0.0, %v382
    %v384 = vpop.f32.mrf.mxu0
    %v385 = vadd.f32 0.0, %v384
    %386 = vdwg.mxu0
    %387 = vmatpush.bf16.msra.mxu0 %v356
    %388 = vmatpush.bf16.msra.mxu0 %v355
    %389 = vmatpush.bf16.msra.mxu0 %v354
    %390 = vmatpush.bf16.msra.mxu0 %v353
    %391 = vmatpush.bf16.msra.mxu0 %v352
    %392 = vmatpush.bf16.msra.mxu0 %v351
    %393 = vmatpush.bf16.msra.mxu0 %v350
    %394 = vmatpush.bf16.msra.mxu0 %v349
    %395 = vmatmul.bf16.gmra.mxu0 %v274
    %v396 = vpop.f32.mrf.mxu0
    %v397 = vadd.f32 %v383, %v396
    %v398 = vpop.f32.mrf.mxu0
    %v399 = vadd.f32 %v385, %v398
    %400 = vdwg.mxu0
    %v401 = vadd.f32 %v397, %v399
    %v402 = vrot.slane %v401, 4
    %v403 = vadd.f32 %v401, %v402
    %v404 = vrot.slane %v403, 2
    %v405 = vadd.f32 %v403, %v404
    %v406 = vrot.slane %v405, 1
    %v407 = vadd.f32 %v405, %v406
    %v408 = vmul.f32 %v407, 0.125
    %v409 = vmul.f32 %v397, %v397
    %v410 = vmul.f32 %v399, %v399
    %v411 = vadd.f32 %v409, %v410
    %v412 = vrot.slane %v411, 4
    %v413 = vadd.f32 %v411, %v412
    %v414 = vrot.slane %v413, 2
    %v415 = vadd.f32 %v413, %v414
    %v416 = vrot.slane %v415, 1
    %v417 = vadd.f32 %v415, %v416
    %v418 = vmul.f32 %v417, 0.125
    %v419 = vmul.f32 %v408, %v408
    %v420 = vsub.f32 %v418, %v419
    %v421 = vmax.f32 %v420, 0.0
    %v422 = vld [vmem:[%s5] sm:$0x1]
    %v423 = vadd.f32 %v421, 1e-05
    %v424 = vrsqrt.pop %v423
    %v425 = vmul.f32 %v424, %v423
    %v426 = vmul.f32 %v425, %v424
    %v427 = vmul.f32 0.5, %v426
    %v428 = vsub.f32 1.5, %v427
    %v429 = vmul.f32 %v424, %v428
    %vm430 = vweird.f32 %v423
    %vm431 = vweird.f32 %v424
    %vm432 = vmor %vm430, %vm431
    %v433 = vsel %vm432, %v424, %v429
    %v434 = vmul.f32 %v422, %v433
    %v435 = vld [vmem:[%s6] sm:$0x1]
    %v436 = vmul.f32 %v408, %v434
    %v437 = vsub.f32 %v435, %v436
    %v439 = vperm.slane %v434, 0
    %v441 = vmul.f32 %v397, %v439
    %v442 = vmul.f32 %v399, %v439
    %v444 = vperm.slane %v437, 0
    %v446 = vadd.f32 %v441, %v444
    %v447 = vadd.f32 %v442, %v444
    %v448 = vmax.f32 %v446, 0.0
    %v449 = vmax.f32 %v447, 0.0
    %v450 = vsel %vm225, %v448, 0.0
    %v451 = vsel %vm226, %v449, 0.0
    %v452 = vpack.c.bf16 %v450, %v450
    %v453 = vpack.c.bf16 %v451, %v451
    %454 = vst [vmem:[#allocation2 + $0x8] sm:$0xf] %v452
    %455 = vst [vmem:[#allocation2 + $0x14] sm:$0xf] %v453
    %v456 = vld [vmem:[#allocation2] sm:$0xff]
    %v457 = vld [vmem:[#allocation2 + $0x8] sm:$0xf]
    %v458 = vld [vmem:[#allocation2 + $0xc] sm:$0xff]
    %v459 = vld [vmem:[#allocation2 + $0x14] sm:$0xf]
    %v460 = vld [vmem:[#allocation7] sm:$0xf]
    %v461 = vld [vmem:[#allocation7 + $0x4] sm:$0xf]
    %v462 = vld [vmem:[#allocation7 + $0x8] sm:$0xf]
    %v463 = vld [vmem:[#allocation7 + $0xc] sm:$0xf]
    %v464 = vld [vmem:[#allocation7 + $0x10] sm:$0xf]
    %v465 = vld [vmem:[#allocation7 + $0x14] sm:$0xf]
    %v466 = vld [vmem:[#allocation7 + $0x18] sm:$0xf]
    %v467 = vld [vmem:[#allocation7 + $0x1c] sm:$0xf]
    %v468 = vld [vmem:[#allocation7 + $0x20] sm:$0xf]
    %v469 = vld [vmem:[#allocation7 + $0x24] sm:$0xf]
    %v470 = vld [vmem:[#allocation7 + $0x28] sm:$0xf]
    %v471 = vld [vmem:[#allocation7 + $0x2c] sm:$0xf]
    %v472 = vld [vmem:[#allocation7 + $0x30] sm:$0xf]
    %v473 = vld [vmem:[#allocation7 + $0x34] sm:$0xf]
    %v474 = vld [vmem:[#allocation7 + $0x38] sm:$0xf]
    %v475 = vld [vmem:[#allocation7 + $0x3c] sm:$0xf]
    %v476 = vld [vmem:[#allocation7 + $0x40] sm:$0xf]
    %v477 = vld [vmem:[#allocation7 + $0x44] sm:$0xf]
    %v478 = vld [vmem:[#allocation7 + $0x48] sm:$0xf]
    %v479 = vld [vmem:[#allocation7 + $0x4c] sm:$0xf]
    %v480 = vld [vmem:[#allocation7 + $0x50] sm:$0xf]
    %v481 = vld [vmem:[#allocation7 + $0x54] sm:$0xf]
    %v482 = vld [vmem:[#allocation7 + $0x58] sm:$0xf]
    %v483 = vld [vmem:[#allocation7 + $0x5c] sm:$0xf]
    %v484 = vld [vmem:[#allocation7 + $0x60] sm:$0xf]
    %v485 = vld [vmem:[#allocation7 + $0x64] sm:$0xf]
    %v486 = vld [vmem:[#allocation7 + $0x68] sm:$0xf]
    %v487 = vld [vmem:[#allocation7 + $0x6c] sm:$0xf]
    %v488 = vld [vmem:[#allocation7 + $0x70] sm:$0xf]
    %v489 = vld [vmem:[#allocation7 + $0x74] sm:$0xf]
    %v490 = vld [vmem:[#allocation7 + $0x78] sm:$0xf]
    %v491 = vld [vmem:[#allocation7 + $0x7c] sm:$0xf]
    %v492 = vld [vmem:[#allocation7 + $0x80] sm:$0xf]
    %v493 = vld [vmem:[#allocation7 + $0x84] sm:$0xf]
    %v494 = vld [vmem:[#allocation7 + $0x88] sm:$0xf]
    %v495 = vld [vmem:[#allocation7 + $0x8c] sm:$0xf]
    %v496 = vld [vmem:[#allocation7 + $0x90] sm:$0xf]
    %v497 = vld [vmem:[#allocation7 + $0x94] sm:$0xf]
    %v498 = vld [vmem:[#allocation7 + $0x98] sm:$0xf]
    %v499 = vld [vmem:[#allocation7 + $0x9c] sm:$0xf]
    %v500 = vld [vmem:[#allocation7 + $0xa0] sm:$0xf]
    %v501 = vld [vmem:[#allocation7 + $0xa4] sm:$0xf]
    %v502 = vld [vmem:[#allocation7 + $0xa8] sm:$0xf]
    %v503 = vld [vmem:[#allocation7 + $0xac] sm:$0xf]
    %v504 = vld [vmem:[#allocation7 + $0xb0] sm:$0xf]
    %v505 = vld [vmem:[#allocation7 + $0xb4] sm:$0xf]
    %v506 = vld [vmem:[#allocation7 + $0xb8] sm:$0xf]
    %v507 = vld [vmem:[#allocation7 + $0xbc] sm:$0xf]
    %v508 = vld [vmem:[%s8] sm:$0x1]
    %v510 = vperm.slane %v508, 0
    %v516 = vunpack.c.l.b16 %v456
    %v517 = vunpack.c.h.b16 %v456
    %v518 = vunpack.c.l.b16 %v457
    %v519 = vunpack.c.l.b16 %v458
    %v520 = vunpack.c.h.b16 %v458
    %v521 = vunpack.c.l.b16 %v459
    %v522 = vpack.c.b16 %v519, %v516
    %v523 = vpack.c.b16 %v520, %v517
    %v524 = vpack.c.b16 %v521, %v518
    %v576 = vunpack.c.l.b16 %v460
    %v577 = vunpack.c.l.b16 %v461
    %v578 = vunpack.c.l.b16 %v462
    %v579 = vunpack.c.l.b16 %v463
    %v580 = vunpack.c.l.b16 %v464
    %v581 = vunpack.c.l.b16 %v465
    %v582 = vunpack.c.l.b16 %v466
    %v583 = vunpack.c.l.b16 %v467
    %v584 = vunpack.c.l.b16 %v468
    %v585 = vunpack.c.l.b16 %v469
    %v586 = vunpack.c.l.b16 %v470
    %v587 = vunpack.c.l.b16 %v471
    %v588 = vunpack.c.l.b16 %v472
    %v589 = vunpack.c.l.b16 %v473
    %v590 = vunpack.c.l.b16 %v474
    %v591 = vunpack.c.l.b16 %v475
    %v592 = vunpack.c.l.b16 %v476
    %v593 = vunpack.c.l.b16 %v477
    %v594 = vunpack.c.l.b16 %v478
    %v595 = vunpack.c.l.b16 %v479
    %v596 = vunpack.c.l.b16 %v480
    %v597 = vunpack.c.l.b16 %v481
    %v598 = vunpack.c.l.b16 %v482
    %v599 = vunpack.c.l.b16 %v483
    %v600 = vunpack.c.l.b16 %v484
    %v601 = vunpack.c.l.b16 %v485
    %v602 = vunpack.c.l.b16 %v486
    %v603 = vunpack.c.l.b16 %v487
    %v604 = vunpack.c.l.b16 %v488
    %v605 = vunpack.c.l.b16 %v489
    %v606 = vunpack.c.l.b16 %v490
    %v607 = vunpack.c.l.b16 %v491
    %v608 = vunpack.c.l.b16 %v492
    %v609 = vunpack.c.l.b16 %v493
    %v610 = vunpack.c.l.b16 %v494
    %v611 = vunpack.c.l.b16 %v495
    %v612 = vunpack.c.l.b16 %v496
    %v613 = vunpack.c.l.b16 %v497
    %v614 = vunpack.c.l.b16 %v498
    %v615 = vunpack.c.l.b16 %v499
    %v616 = vunpack.c.l.b16 %v500
    %v617 = vunpack.c.l.b16 %v501
    %v618 = vunpack.c.l.b16 %v502
    %v619 = vunpack.c.l.b16 %v503
    %v620 = vunpack.c.l.b16 %v504
    %v621 = vunpack.c.l.b16 %v505
    %v622 = vunpack.c.l.b16 %v506
    %v623 = vunpack.c.l.b16 %v507
    %v624 = vpack.c.b16 %v577, %v576
    %v625 = vpack.c.b16 %v579, %v578
    %v626 = vpack.c.b16 %v581, %v580
    %v627 = vpack.c.b16 %v583, %v582
    %v628 = vpack.c.b16 %v585, %v584
    %v629 = vpack.c.b16 %v587, %v586
    %v630 = vpack.c.b16 %v589, %v588
    %v631 = vpack.c.b16 %v591, %v590
    %v632 = vpack.c.b16 %v593, %v592
    %v633 = vpack.c.b16 %v595, %v594
    %v634 = vpack.c.b16 %v597, %v596
    %v635 = vpack.c.b16 %v599, %v598
    %v636 = vpack.c.b16 %v601, %v600
    %v637 = vpack.c.b16 %v603, %v602
    %v638 = vpack.c.b16 %v605, %v604
    %v639 = vpack.c.b16 %v607, %v606
    %v640 = vpack.c.b16 %v609, %v608
    %v641 = vpack.c.b16 %v611, %v610
    %v642 = vpack.c.b16 %v613, %v612
    %v643 = vpack.c.b16 %v615, %v614
    %v644 = vpack.c.b16 %v617, %v616
    %v645 = vpack.c.b16 %v619, %v618
    %v646 = vpack.c.b16 %v621, %v620
    %v647 = vpack.c.b16 %v623, %v622
    %672 = vmatpush.bf16.msra.mxu0 %v631
    %673 = vmatpush.bf16.msra.mxu0 %v630
    %674 = vmatpush.bf16.msra.mxu0 %v629
    %675 = vmatpush.bf16.msra.mxu0 %v628
    %676 = vmatpush.bf16.msra.mxu0 %v627
    %677 = vmatpush.bf16.msra.mxu0 %v626
    %678 = vmatpush.bf16.msra.mxu0 %v625
    %679 = vmatpush.bf16.msra.mxu0 %v624
    %680 = vmatmul.bf16.gmra.mxu0 %v522
    %v681 = vpop.f32.mrf.mxu0
    %v682 = vadd.f32 %v510, %v681
    %v683 = vpop.f32.mrf.mxu0
    %v684 = vadd.f32 %v510, %v683
    %685 = vdwg.mxu0
    %686 = vmatpush.bf16.msra.mxu0 %v639
    %687 = vmatpush.bf16.msra.mxu0 %v638
    %688 = vmatpush.bf16.msra.mxu0 %v637
    %689 = vmatpush.bf16.msra.mxu0 %v636
    %690 = vmatpush.bf16.msra.mxu0 %v635
    %691 = vmatpush.bf16.msra.mxu0 %v634
    %692 = vmatpush.bf16.msra.mxu0 %v633
    %693 = vmatpush.bf16.msra.mxu0 %v632
    %694 = vmatmul.bf16.gmra.mxu0 %v523
    %v695 = vpop.f32.mrf.mxu0
    %v696 = vadd.f32 %v682, %v695
    %v697 = vpop.f32.mrf.mxu0
    %v698 = vadd.f32 %v684, %v697
    %699 = vdwg.mxu0
    %700 = vmatpush.bf16.msra.mxu0 %v647
    %701 = vmatpush.bf16.msra.mxu0 %v646
    %702 = vmatpush.bf16.msra.mxu0 %v645
    %703 = vmatpush.bf16.msra.mxu0 %v644
    %704 = vmatpush.bf16.msra.mxu0 %v643
    %705 = vmatpush.bf16.msra.mxu0 %v642
    %706 = vmatpush.bf16.msra.mxu0 %v641
    %707 = vmatpush.bf16.msra.mxu0 %v640
    %708 = vmatmul.bf16.gmra.mxu0 %v524
    %v709 = vpop.f32.mrf.mxu0
    %v710 = vadd.f32 %v696, %v709
    %v711 = vpop.f32.mrf.mxu0
    %v712 = vadd.f32 %v698, %v711
    %713 = vdwg.mxu0
    %714 = vst [vmem:[%s9] sm:$0xff] %v710
    %715 = vst [vmem:[%s9 + $0x8] sm:$0xff] %v712
    // Predicated region
    $region50: #{forward.1} parent=1 // pred_check
      _
    $region51: #{forward.1} parent=1 // pred_check_branch
      %717 = sbr.rel (0) target = $region53
    $region52: #{forward.1} parent=1 // pred_region
      _
    $region53: #{forward.1} parent=1 // pred_fallthru
      _
    // Predicated region
    $region54: #{forward.1} parent=1 // pred_check
      _
    $region55: #{forward.1} parent=1 // pred_check_branch
      %719 = sbr.rel (0) target = $region57
    $region56: #{forward.1} parent=1 // pred_region
      _
    $region57: #{forward.1} parent=1 // pred_fallthru
      _
    %720 = vsyncpa [#allocation4], 1
    %721 = vsyncpa [#allocation6], 1

</llo_original>
